<compile_context>
chip_gen: v7x
topology: tpu7x:2x2x1
jax: 0.10.0
libtpu: 0.0.40
codegen_flags: <defaults>
</compile_context>

<pallas_src>
import math

import jax
import jax.numpy as jnp
from jax.experimental import pallas as pl
from jax.experimental.pallas import tpu as pltpu


def add_pe_kernel(x_ref, pe_ref, o_ref):
    # x_ref: (tB, tC), pe_ref: (1, tC) -> broadcast add over the batch rows.
    o_ref[...] = (x_ref[...] + pe_ref[...]).astype(o_ref.dtype)


def make_sinusoidal_pe(d_model: int, max_len: int = 5000) -> jnp.ndarray:
    """Mirrors the PyTorch buffer construction (d_model expected even; for odd
    d_model only floor(d/2) cos columns are written, matching what the slice
    shapes allow)."""
    position = jnp.arange(max_len, dtype=jnp.float32)[:, None]
    div_term = jnp.exp(
        jnp.arange(0, d_model, 2, dtype=jnp.float32) * (-math.log(10000.0) / d_model)
    )
    pe = jnp.zeros((max_len, d_model), dtype=jnp.float32)
    pe = pe.at[:, 0::2].set(jnp.sin(position * div_term))
    pe = pe.at[:, 1::2].set(jnp.cos(position * div_term)[:, : d_model // 2])
    return pe


def _pick_tiles(B: int, C: int, itemsize: int, target_bytes: int = 4 << 20):
    """Closed-form block pick for a memory-bound (B, C) elementwise op.

    * sublane multiple is dtype-aware (8 f32, 16 bf16, 32 int8/fp8),
    * C (lane) axis is tiled into 128-multiples only when even the smallest
      legal batch tile of the full row would exceed the byte budget,
    * batch tile sized so one block is ~target_bytes; a cdiv grid (Pallas masks
      the partial last block) removes any divisibility requirement,
    * if the whole array would be a single step but traffic is non-trivial,
      halve the batch tile so the parallel axis has >=2 steps (megacore/v7x).
    """
    sub = max(8, 32 // itemsize)   # sublane multiple per dtype
    lane = 128

    # Lane (C) tiling, only when necessary and only if C is 128-aligned
    # (otherwise the full-dim block is the only legal choice).
    tC = C
    min_rows = min(B, sub)
    if C % lane == 0 and min_rows * C * itemsize > target_bytes:
        tC = (target_bytes // (min_rows * itemsize)) // lane * lane
        tC = max(lane, min(tC, C))

    # Batch (sublane) tiling, closed form.
    rows = max(1, target_bytes // (tC * itemsize))
    if rows >= B or B <= sub:
        tB = B
    else:
        tB = max(sub, (rows // sub) * sub)

    # Guarantee >=2 grid steps along the parallel batch axis when traffic is
    # non-trivial, so a 2-TensorCore chip can split the work.
    total_bytes = B * C * itemsize
    if tB == B and B >= 2 * sub and total_bytes > (1 << 20):
        tB = ((B // 2) // sub) * sub

    return tB, tC


def positional_embedding(x: jnp.ndarray, pe: jnp.ndarray, *, donate_x: bool = False
                         ) -> jnp.ndarray:
    """x: (B, S, D).  pe: (max_len, D).  Returns x + pe[None, :S, :]."""
    B, S, D = x.shape
    C = S * D

    # Lane-dense slab (free layout plumbing on contiguous memory) + pe row in
    # the activation dtype so the add stays on the native VPU path.
    xf = x.reshape(B, C)
    pef = jax.lax.slice(pe, (0, 0), (S, D)).reshape(1, C).astype(x.dtype)

    itemsize = jnp.dtype(x.dtype).itemsize
    tB, tC = _pick_tiles(B, C, itemsize)
    grid = (pl.cdiv(B, tB), pl.cdiv(C, tC))

    block_bytes = tB * tC * itemsize
    # 2x input + 2x output double buffers + pe row + slack; capped well under
    # v7x's 64 MiB physical VMEM.
    vmem_limit = int(min(48 << 20, max(16 << 20, 4 * block_bytes + (2 << 20))))

    out = pl.pallas_call(
        add_pe_kernel,
        out_shape=jax.ShapeDtypeStruct((B, C), x.dtype),
        grid=grid,
        in_specs=[
            pl.BlockSpec((tB, tC), lambda b, c: (b, c)),
            pl.BlockSpec((1, tC), lambda b, c: (0, c)),  # batch-invariant pe row
        ],
        out_specs=pl.BlockSpec((tB, tC), lambda b, c: (b, c)),
        compiler_params=pltpu.CompilerParams(
            dimension_semantics=("parallel", "parallel"),
            vmem_limit_bytes=vmem_limit,
        ),
        # Only alias when the caller actually donates x (avoids forced copies
        # in a standalone call).
        input_output_aliases=({0: 0} if donate_x else {}),
    )(xf, pef)
    return out.reshape(B, S, D)


if __name__ == "__main__":
    B, S, D = 2, 8, 32          # small shapes consistent with the module
    key = jax.random.PRNGKey(0)
    x = jax.random.normal(key, (B, S, D), dtype=jnp.float32)
    pe = make_sinusoidal_pe(D, max_len=5000)

    out = jax.block_until_ready(positional_embedding(x, pe))

    ref = x + pe[None, :S, :]
    assert out.shape == (B, S, D)
    assert jnp.allclose(out, ref, atol=1e-6, rtol=1e-6), float(
        jnp.max(jnp.abs(out - ref))
    )
    print("KERNEL_OK")
</pallas_src>

<mosaic_0001>
module attributes {stable_mosaic.version = 11 : i64} {
  func.func @add_pe_kernel(%arg0: i32, %arg1: i32, %arg2: memref<2x256xf32, #tpu.memory_space<vmem>>, %arg3: memref<1x256xf32, #tpu.memory_space<vmem>>, %arg4: memref<2x256xf32, #tpu.memory_space<vmem>>) attributes {dimension_semantics = [#tpu.dimension_semantics<parallel>, #tpu.dimension_semantics<parallel>], iteration_bounds = array<i64: 1, 1>, scalar_prefetch = 0 : i64, scratch_operands = 0 : i64, tpu.core_type = #tpu.core_type<tc>, window_params = [{transform_indices = @transform_0, window_bounds = array<i64: 2, 256>}, {transform_indices = @transform_1, window_bounds = array<i64: 1, 256>}, {transform_indices = @transform_2, window_bounds = array<i64: 2, 256>}]} {
    %c0 = arith.constant 0 : index
    %c0_0 = arith.constant 0 : index
    %0 = vector.load %arg2[%c0, %c0_0] : memref<2x256xf32, #tpu.memory_space<vmem>>, vector<2x256xf32>
    %c0_1 = arith.constant 0 : index
    %c0_2 = arith.constant 0 : index
    %1 = vector.load %arg3[%c0_1, %c0_2] : memref<1x256xf32, #tpu.memory_space<vmem>>, vector<1x256xf32>
    %2 = vector.broadcast %1 : vector<1x256xf32> to vector<2x256xf32>
    %3 = arith.addf %0, %2 : vector<2x256xf32>
    %c0_3 = arith.constant 0 : index
    %c0_4 = arith.constant 0 : index
    %4 = vector.load %arg4[%c0_3, %c0_4] : memref<2x256xf32, #tpu.memory_space<vmem>>, vector<2x256xf32>
    tpu.vector_store %arg4[%c0_3, %c0_4], %3 {strides = array<i32>} : memref<2x256xf32, #tpu.memory_space<vmem>>, vector<2x256xf32>,
    return
  }
  func.func @transform_0(%arg0: i32, %arg1: i32) -> (i32, i32) {
    %c0_i32 = arith.constant 0 : i32
    return %arg0, %arg1 : i32, i32
  }
  func.func @transform_1(%arg0: i32, %arg1: i32) -> (i32, i32) {
    %c0_i32 = arith.constant 0 : i32
    %c0_i32_0 = arith.constant 0 : i32
    return %c0_i32, %arg1 : i32, i32
  }
  func.func @transform_2(%arg0: i32, %arg1: i32) -> (i32, i32) {
    %c0_i32 = arith.constant 0 : i32
    return %arg0, %arg1 : i32, i32
  }
}

</mosaic_0001>

<llo_original>
// kernel: tpu_custom_call.1
$region0: #{tpu_custom_call.1}
  #allocation0 [shape = 'u32[]', space=smem, size = 0x4, offset = 0x4, fixed_abs, tag = 'smem constant byte address 0x4 - core index']
  #allocation1 [shape = 'u32[144,128]{1,0:T(1,128)}', space=vmem, size = 0x12000, scoped, tag = 'internal scratch']
  %s0 = inlined_call_operand.hbm [shape: f32[2,256], index: 0, kind: input, shape index: {}]
  %s1 = inlined_call_operand.vmem [shape: f32[1,256], index: 1, kind: input, shape index: {}]
  %s2 = inlined_call_operand.hbm [shape: f32[2,256], index: 2, kind: output, shape index: {}]
  %s3 = sld [smem:[#allocation0]]
  $region22: #{tpu_custom_call.1} parent=0
    _
  %s5 = ssub.s32 1, %s3
  %s6 = scalar_select 0, %s5, %s3
  $region1: #{tpu_custom_call.1} parent=0
    #allocation2 [shape = 'u8[2048]{0}', space=vmem, size = 0x800, scoped, tag = 'input window, operand 0, single buffered']
    #allocation3 [shape = 's32[1]{0}', space=sflag, size = 0x4, scoped, tag = 'scoped memory for tpu_custom_call.1']
    #allocation4 [shape = 's32[1]{0}', space=sflag, size = 0x4, scoped, tag = 'scoped memory for tpu_custom_call.1']
    #allocation5 [shape = 'u8[2048]{0}', space=vmem, size = 0x800, scoped, tag = 'output window, operand 0, single buffered']
    %7 = vsyncpa [#allocation3], 0
    %8 = vsyncpa [#allocation4], 0
    // Predicated region
    $region2: #{tpu_custom_call.1} parent=1 // pred_check
      _
    $region3: #{tpu_custom_call.1} parent=1 // pred_check_branch
      %10 = sbr.rel (0) target = $region5
    $region4: #{tpu_custom_call.1} parent=1 // pred_region
      %s12 = ssub.s32 64, 64
      %13 = vsyncadd [#allocation3], %s12
      %s15 = sshll.u32 [#allocation2], 4
      %s16 = int_to_ptr.vmem [resolvable:$true] %s15
      %18 = dma.hbm_to_vmem [thread:$0]  %s0, 64, %s16, [#allocation3]
    $region5: #{tpu_custom_call.1} parent=1 // pred_fallthru
      _
    // Predicated region
    $region6: #{tpu_custom_call.1} parent=1 // pred_check
      _
    $region7: #{tpu_custom_call.1} parent=1 // pred_check_branch
      %20 = sbr.rel (0) target = $region9
    $region8: #{tpu_custom_call.1} parent=1 // pred_region
      _
    $region9: #{tpu_custom_call.1} parent=1 // pred_fallthru
      _
    // Predicated region
    $region10: #{tpu_custom_call.1} parent=1 // pred_check
      _
    $region11: #{tpu_custom_call.1} parent=1 // pred_check_branch
      %22 = sbr.rel (0) target = $region13
    $region12: #{tpu_custom_call.1} parent=1 // pred_region
      %23 = dma.done [#allocation3], 64
    $region13: #{tpu_custom_call.1} parent=1 // pred_fallthru
      _
    %v24 = vld [vmem:[#allocation2] sm:$0xf]
    %v25 = vld [vmem:[%s1] sm:$0x3]
    %v27 = vlaneseq
    %v28 = vshrl.u32 %v27, 7
    %v29 = vsub.s32 0, %v28
    %v30 = vrot.slane %v25, %v29
    %v31 = vlaneseq
    %v32 = vshrl.u32 %v31, 7
    %v33 = vsub.s32 1, %v32
    %v34 = vrot.slane %v25, %v33
    %v35 = vcombine.low %v30, %v34
    %v37 = vunpack.c.l.s4 1983009808
    %v38 = vunpack.c.0.s8 %v37
    %v39 = vlaneseq
    %v40 = vshrl.u32 %v39, 7
    %v41 = vsub.s32 %v38, %v40
    %v42 = vrot.slane %v35, %v41
    %v44 = vadd.f32 %v24, %v42
    %45 = vst [vmem:[#allocation5] sm:$0xf] %v44
    // Predicated region
    $region14: #{tpu_custom_call.1} parent=1 // pred_check
      _
    $region15: #{tpu_custom_call.1} parent=1 // pred_check_branch
      %47 = sbr.rel (0) target = $region17
    $region16: #{tpu_custom_call.1} parent=1 // pred_region
      %s49 = ssub.s32 64, 64
      %50 = vsyncadd [#allocation4], %s49
      %s52 = sshll.u32 [#allocation5], 4
      %s53 = int_to_ptr.vmem [resolvable:$true] %s52
      %55 = dma.vmem_to_hbm [thread:$0]  %s53, 64, %s2, [#allocation4]
    $region17: #{tpu_custom_call.1} parent=1 // pred_fallthru
      _
    // Predicated region
    $region18: #{tpu_custom_call.1} parent=1 // pred_check
      _
    $region19: #{tpu_custom_call.1} parent=1 // pred_check_branch
      %57 = sbr.rel (0) target = $region21
    $region20: #{tpu_custom_call.1} parent=1 // pred_region
      %58 = dma.done [#allocation4], 64
    $region21: #{tpu_custom_call.1} parent=1 // pred_fallthru
      _
    %59 = vsyncpa [#allocation3], 1
    %60 = vsyncpa [#allocation4], 1

</llo_original>
